<compile_context>
chip_gen: v7x
topology: tpu7x:2x2x1
jax: 0.10.0
libtpu: 0.0.40
codegen_flags: <defaults>
</compile_context>

<pallas_src>
import functools

import jax
import jax.numpy as jnp
from jax.experimental import pallas as pl
from jax.experimental.pallas import tpu as pltpu

N_NODES = 248          # real node / feature count
H2 = 180               # hidden_layer_2 out_features
H3 = 80                # hidden_layer_3 out_features
NP = 256               # node dim padded to lane-dense width
H2P = 256              # hidden-2 padded
H3P = 128              # hidden-3 (output) padded
BN_EPS = 1e-5
MAX_TB = 2048          # max batch-tile rows per grid step
ROW_ALIGN = 16         # batch-row alignment granularity


def _round_up(n, m):
    return ((n + m - 1) // m) * m


def _cdiv(a, b):
    return (a + b - 1) // b


def _device_kind():
    try:
        return jax.devices()[0].device_kind.lower()
    except Exception:
        return ""


def _num_tensorcores():
    # v7x exposes 2 TensorCores per chip; v5e/v6e have 1.
    return 2 if "v7" in _device_kind() else 1


def _use_bf16_tanh():
    # v6e/v7x have bf16 VPU/EUP paths; v5e does not (bf16 tanh would just add casts).
    return "v5" not in _device_kind()


def _encoder_kernel(x_ref, aT_ref, b1_ref, w2T_ref, b2_ref, w3T_ref, b3_ref,
                    out_ref, *, tanh_bf16):
    act_dtype = jnp.bfloat16 if tanh_bf16 else jnp.float32

    # --- GCNConv (graph aggregation as matmul, weight folded into aT) + bias ---
    h = jnp.dot(x_ref[...].astype(jnp.bfloat16), aT_ref[...],
                preferred_element_type=jnp.float32) + b1_ref[...]   # (TB, 256) f32
    # --- act_1 = Tanh (bf16 on v6e/v7x, f32 on v5e); dropout=identity;
    #     BatchNorm folded into W2/b2 ---
    h = jnp.tanh(h.astype(act_dtype))
    # --- hidden_layer_2: Linear 248 -> 180 (padded to 256) ---
    h = jnp.dot(h.astype(jnp.bfloat16), w2T_ref[...],
                preferred_element_type=jnp.float32) + b2_ref[...]   # (TB, 256) f32
    # --- act_2 = Tanh; dropout=identity ---
    h = jnp.tanh(h.astype(act_dtype))
    # --- hidden_layer_3: Linear 180 -> 80 (padded to 128, lane-dense store) ---
    out_ref[...] = (jnp.dot(h.astype(jnp.bfloat16), w3T_ref[...],
                            preferred_element_type=jnp.float32)
                    + b3_ref[...]).astype(out_ref.dtype)            # (TB, 128)


@functools.partial(jax.jit, static_argnames=("tb", "tanh_bf16"))
def _run_kernel(x2d, aT, b1, w2T, b2, w3T, b3, *, tb, tanh_bf16):
    b_pad, n = x2d.shape
    grid = (b_pad // tb,)

    flops = 2 * b_pad * (n * NP + NP * H2P + H2P * H3P)
    transcendentals = b_pad * (NP + H2P)
    bytes_accessed = (x2d.size * 4                                # x in (f32)
                      + (aT.size + w2T.size + w3T.size) * 2       # bf16 weights
                      + (b1.size + b2.size + b3.size) * 4         # f32 biases
                      + b_pad * H3P * 4)                          # out (f32)

    return pl.pallas_call(
        functools.partial(_encoder_kernel, tanh_bf16=tanh_bf16),
        out_shape=jax.ShapeDtypeStruct((b_pad, H3P), jnp.float32),
        grid=grid,
        in_specs=[
            pl.BlockSpec((tb, n), lambda i: (i, 0)),        # x tile (per grid step)
            pl.BlockSpec((n, NP), lambda i: (0, 0)),        # A_effT  (resident)
            pl.BlockSpec((1, NP), lambda i: (0, 0)),        # b1      (resident)
            pl.BlockSpec((NP, H2P), lambda i: (0, 0)),      # W2T     (resident)
            pl.BlockSpec((1, H2P), lambda i: (0, 0)),       # b2      (resident)
            pl.BlockSpec((H2P, H3P), lambda i: (0, 0)),     # W3T     (resident)
            pl.BlockSpec((1, H3P), lambda i: (0, 0)),       # b3      (resident)
        ],
        out_specs=pl.BlockSpec((tb, H3P), lambda i: (i, 0)),
        compiler_params=pltpu.CompilerParams(
            dimension_semantics=("parallel",)),
        cost_estimate=pl.CostEstimate(
            flops=flops,
            transcendentals=transcendentals,
            bytes_accessed=bytes_accessed),
    )(x2d, aT, b1, w2T, b2, w3T, b3)


def build_normalized_adjacency(edge_index, num_nodes):
    """A_hat = D^{-1/2} (A + I) D^{-1/2}, matching torch_geometric GCNConv.

    Note: edges are symmetrized (A[dst,src]=1); this matches GCNConv only if the
    reference graph is undirected / edges are already present in both directions.
    """
    src, dst = edge_index
    A = jnp.zeros((num_nodes, num_nodes), jnp.float32)
    A = A.at[src, dst].set(1.0)
    A = A.at[dst, src].set(1.0)
    A = A + jnp.eye(num_nodes, dtype=jnp.float32)      # self loops
    deg = jnp.sum(A, axis=1)
    d_inv_sqrt = 1.0 / jnp.sqrt(deg)
    return (A * d_inv_sqrt[:, None]) * d_inv_sqrt[None, :]


def _pad2d(a, rows, cols):
    return jnp.pad(a, ((0, rows - a.shape[0]), (0, cols - a.shape[1])))


class EncoderGraphZone0:
    """JAX/Pallas re-implementation of GEN_autoEncoderGCN_Encoder_graph_zone0."""

    def __init__(self, edge_index, key):
        k_gw, k_gb, k_w2, k_b2, k_w3, k_b3 = jax.random.split(key, 6)

        # GCNConv(1, 1): scalar weight + scalar bias
        gcn_w = jax.random.normal(k_gw, ()) * 0.5
        gcn_b = jax.random.normal(k_gb, ()) * 0.1

        # Linear(248 -> 180), Linear(180 -> 80)
        W2 = jax.random.normal(k_w2, (H2, N_NODES)) * (1.0 / jnp.sqrt(N_NODES))
        b2 = jax.random.normal(k_b2, (H2,)) * 0.01
        W3 = jax.random.normal(k_w3, (H3, H2)) * (1.0 / jnp.sqrt(H2))
        b3 = jax.random.normal(k_b3, (H3,)) * 0.01

        # BatchNorm1d(1, affine=True), eval mode: running_mean=0, running_var=1
        bn_gamma, bn_beta = jnp.float32(1.0), jnp.float32(0.0)
        bn_mean, bn_var = jnp.float32(0.0), jnp.float32(1.0)
        bn_scale = bn_gamma / jnp.sqrt(bn_var + BN_EPS)
        bn_shift = bn_beta - bn_mean * bn_scale

        # --- Final-layout, final-dtype parameters (built once, here) ---
        # GCN: normalized adjacency with scalar weight folded in, transposed,
        # padded, bf16.  (bf16 weights ~1e-2 rel. error vs f32 PyTorch reference.)
        A_hat = build_normalized_adjacency(edge_index, N_NODES)
        A_effT = (A_hat * gcn_w).T                                  # (248, 248)
        self.A_effT = _pad2d(A_effT, N_NODES, NP).astype(jnp.bfloat16)
        self.b1 = jnp.full((1, NP), gcn_b, jnp.float32)             # GCN bias row

        # Linear 2 with the eval-mode BatchNorm affine folded in (exact algebra):
        #   (h*s + t) @ W2^T + b2 == h @ (s*W2^T) + (b2 + t*sum_in(W2))
        W2T_eff = bn_scale * W2.T                                   # (248, 180)
        b2_eff = b2 + bn_shift * jnp.sum(W2, axis=1)                # (180,)
        self.W2T = _pad2d(W2T_eff, NP, H2P).astype(jnp.bfloat16)    # (256, 256)
        self.b2 = _pad2d(b2_eff[None, :], 1, H2P).astype(jnp.float32)

        # Linear 3, output padded 80 -> 128 for lane-dense stores.
        self.W3T = _pad2d(W3.T, H2P, H3P).astype(jnp.bfloat16)      # (256, 128)
        self.b3 = _pad2d(b3[None, :], 1, H3P).astype(jnp.float32)

        # Padding invariant: b1 broadcasts gcn_b into lanes 248..255, so tanh(gcn_b)
        # appears there; it is nulled only because W2T rows >= 248 are zero.
        assert bool(jnp.all(self.W2T[N_NODES:, :] == 0))
        assert bool(jnp.all(self.W2T[:, H2:] == 0))
        assert bool(jnp.all(self.W3T[H2:, :] == 0))

        self._num_cores = _num_tensorcores()
        self._tanh_bf16 = _use_bf16_tanh()

    def _choose_tiling(self, B):
        # Number of grid steps: enough to keep tiles <= MAX_TB rows, and at least
        # num_cores steps (v7x) once B is large enough that the split pays off.
        n_steps = max(1, _cdiv(B, MAX_TB))
        if self._num_cores > 1 and B >= 256:
            n_steps = max(n_steps, self._num_cores)
        # Round batch only to 16*n_steps rows -> minimal tail padding, tb stays
        # sublane-aligned and all tiles are equal-sized.
        b_pad = _round_up(B, ROW_ALIGN * n_steps)
        tb = b_pad // n_steps
        return tb, b_pad

    def __call__(self, x):
        # x: (B, 1, 248) float32  (PyTorch convention: (batch, channel=1, nodes))
        B = x.shape[0]
        x2d = x[:, 0, :].astype(jnp.float32)                        # (B, 248)

        tb, b_pad = self._choose_tiling(B)
        if b_pad != B:
            # Only a small tail (< 16*n_steps rows) is ever padded.
            x2d = jnp.pad(x2d, ((0, b_pad - B), (0, 0)))

        out_pad = _run_kernel(x2d, self.A_effT, self.b1, self.W2T, self.b2,
                              self.W3T, self.b3, tb=tb,
                              tanh_bf16=self._tanh_bf16)            # (b_pad, 128)
        # Slice back to the module's (B, 1, 80) contract.
        x_out = out_pad[:B, :H3][:, None, :]
        return {"x_input": x, "x_output": x_out}


if __name__ == "__main__":
    key = jax.random.PRNGKey(0)
    k_param, k_x = jax.random.split(key)

    # Deterministic synthetic graph: ring over 248 nodes.
    src = jnp.arange(N_NODES, dtype=jnp.int32)
    dst = (src + 1) % N_NODES
    edge_index = jnp.stack([src, dst])                  # (2, 248)

    model = EncoderGraphZone0(edge_index, k_param)

    B = 8
    x = jax.random.normal(k_x, (B, 1, N_NODES), dtype=jnp.float32)

    out = model(x)
    jax.block_until_ready(out["x_output"])

    assert out["x_input"].shape == (B, 1, N_NODES)
    assert out["x_output"].shape == (B, 1, H3)
    assert bool(jnp.all(jnp.isfinite(out["x_output"])))
    print("KERNEL_OK")
</pallas_src>

<mosaic_0001>
module attributes {stable_mosaic.version = 11 : i64} {
  func.func @_encoder_kernel(%arg0: i32, %arg1: memref<16x248xf32, #tpu.memory_space<vmem>>, %arg2: memref<248x256xbf16, #tpu.memory_space<vmem>>, %arg3: memref<1x256xf32, #tpu.memory_space<vmem>>, %arg4: memref<256x256xbf16, #tpu.memory_space<vmem>>, %arg5: memref<1x256xf32, #tpu.memory_space<vmem>>, %arg6: memref<256x128xbf16, #tpu.memory_space<vmem>>, %arg7: memref<1x128xf32, #tpu.memory_space<vmem>>, %arg8: memref<16x128xf32, #tpu.memory_space<vmem>>) attributes {dimension_semantics = [#tpu.dimension_semantics<parallel>], iteration_bounds = array<i64: 1>, scalar_prefetch = 0 : i64, scratch_operands = 0 : i64, tpu.core_type = #tpu.core_type<tc>, window_params = [{transform_indices = @transform_0, window_bounds = array<i64: 16, 248>}, {pipeline_mode = #tpu.pipeline_mode<synchronous>, transform_indices = @transform_1, window_bounds = array<i64: 248, 256>}, {pipeline_mode = #tpu.pipeline_mode<synchronous>, transform_indices = @transform_2, window_bounds = array<i64: 1, 256>}, {pipeline_mode = #tpu.pipeline_mode<synchronous>, transform_indices = @transform_3, window_bounds = array<i64: 256, 256>}, {pipeline_mode = #tpu.pipeline_mode<synchronous>, transform_indices = @transform_4, window_bounds = array<i64: 1, 256>}, {pipeline_mode = #tpu.pipeline_mode<synchronous>, transform_indices = @transform_5, window_bounds = array<i64: 256, 128>}, {pipeline_mode = #tpu.pipeline_mode<synchronous>, transform_indices = @transform_6, window_bounds = array<i64: 1, 128>}, {transform_indices = @transform_7, window_bounds = array<i64: 16, 128>}]} {
    %c0 = arith.constant 0 : index
    %c0_0 = arith.constant 0 : index
    %0 = vector.load %arg1[%c0, %c0_0] : memref<16x248xf32, #tpu.memory_space<vmem>>, vector<16x248xf32>
    %1 = arith.truncf %0 : vector<16x248xf32> to vector<16x248xbf16>
    %c0_1 = arith.constant 0 : index
    %c0_2 = arith.constant 0 : index
    %2 = vector.load %arg2[%c0_1, %c0_2] : memref<248x256xbf16, #tpu.memory_space<vmem>>, vector<248x256xbf16>
    %cst = arith.constant dense<0.000000e+00> : vector<16x256xf32>
    %3 = tpu.matmul %1, %2, %cst {dimension_numbers = #tpu.dot_dimension_numbers<[1], [0], [0], [1], [0, 0, 1, 1], [], []>} : vector<16x248xbf16>, vector<248x256xbf16>, vector<16x256xf32> -> vector<16x256xf32>
    %c0_3 = arith.constant 0 : index
    %c0_4 = arith.constant 0 : index
    %4 = vector.load %arg3[%c0_3, %c0_4] : memref<1x256xf32, #tpu.memory_space<vmem>>, vector<1x256xf32>
    %5 = vector.broadcast %4 : vector<1x256xf32> to vector<16x256xf32>
    %6 = arith.addf %3, %5 : vector<16x256xf32>
    %7 = arith.truncf %6 : vector<16x256xf32> to vector<16x256xbf16>
    %8 = math.tanh %7 : vector<16x256xbf16>
    %c0_5 = arith.constant 0 : index
    %c0_6 = arith.constant 0 : index
    %9 = vector.load %arg4[%c0_5, %c0_6] : memref<256x256xbf16, #tpu.memory_space<vmem>>, vector<256x256xbf16>
    %cst_7 = arith.constant dense<0.000000e+00> : vector<16x256xf32>
    %10 = tpu.matmul %8, %9, %cst_7 {dimension_numbers = #tpu.dot_dimension_numbers<[1], [0], [0], [1], [0, 0, 1, 1], [], []>} : vector<16x256xbf16>, vector<256x256xbf16>, vector<16x256xf32> -> vector<16x256xf32>
    %c0_8 = arith.constant 0 : index
    %c0_9 = arith.constant 0 : index
    %11 = vector.load %arg5[%c0_8, %c0_9] : memref<1x256xf32, #tpu.memory_space<vmem>>, vector<1x256xf32>
    %12 = vector.broadcast %11 : vector<1x256xf32> to vector<16x256xf32>
    %13 = arith.addf %10, %12 : vector<16x256xf32>
    %14 = arith.truncf %13 : vector<16x256xf32> to vector<16x256xbf16>
    %15 = math.tanh %14 : vector<16x256xbf16>
    %c0_10 = arith.constant 0 : index
    %c0_11 = arith.constant 0 : index
    %16 = vector.load %arg6[%c0_10, %c0_11] : memref<256x128xbf16, #tpu.memory_space<vmem>>, vector<256x128xbf16>
    %cst_12 = arith.constant dense<0.000000e+00> : vector<16x128xf32>
    %17 = tpu.matmul %15, %16, %cst_12 {dimension_numbers = #tpu.dot_dimension_numbers<[1], [0], [0], [1], [0, 0, 1, 1], [], []>} : vector<16x256xbf16>, vector<256x128xbf16>, vector<16x128xf32> -> vector<16x128xf32>
    %c0_13 = arith.constant 0 : index
    %c0_14 = arith.constant 0 : index
    %18 = vector.load %arg7[%c0_13, %c0_14] : memref<1x128xf32, #tpu.memory_space<vmem>>, vector<1x128xf32>
    %19 = vector.broadcast %18 : vector<1x128xf32> to vector<16x128xf32>
    %20 = arith.addf %17, %19 : vector<16x128xf32>
    %c0_15 = arith.constant 0 : index
    %c0_16 = arith.constant 0 : index
    %21 = vector.load %arg8[%c0_15, %c0_16] : memref<16x128xf32, #tpu.memory_space<vmem>>, vector<16x128xf32>
    tpu.vector_store %arg8[%c0_15, %c0_16], %20 {strides = array<i32>} : memref<16x128xf32, #tpu.memory_space<vmem>>, vector<16x128xf32>,
    return
  }
  func.func @transform_0(%arg0: i32) -> (i32, i32) {
    %c0_i32 = arith.constant 0 : i32
    %c0_i32_0 = arith.constant 0 : i32
    return %arg0, %c0_i32 : i32, i32
  }
  func.func @transform_1(%arg0: i32) -> (i32, i32) {
    %c0_i32 = arith.constant 0 : i32
    %c0_i32_0 = arith.constant 0 : i32
    %c0_i32_1 = arith.constant 0 : i32
    return %c0_i32, %c0_i32_0 : i32, i32
  }
  func.func @transform_2(%arg0: i32) -> (i32, i32) {
    %c0_i32 = arith.constant 0 : i32
    %c0_i32_0 = arith.constant 0 : i32
    %c0_i32_1 = arith.constant 0 : i32
    return %c0_i32, %c0_i32_0 : i32, i32
  }
  func.func @transform_3(%arg0: i32) -> (i32, i32) {
    %c0_i32 = arith.constant 0 : i32
    %c0_i32_0 = arith.constant 0 : i32
    %c0_i32_1 = arith.constant 0 : i32
    return %c0_i32, %c0_i32_0 : i32, i32
  }
  func.func @transform_4(%arg0: i32) -> (i32, i32) {
    %c0_i32 = arith.constant 0 : i32
    %c0_i32_0 = arith.constant 0 : i32
    %c0_i32_1 = arith.constant 0 : i32
    return %c0_i32, %c0_i32_0 : i32, i32
  }
  func.func @transform_5(%arg0: i32) -> (i32, i32) {
    %c0_i32 = arith.constant 0 : i32
    %c0_i32_0 = arith.constant 0 : i32
    %c0_i32_1 = arith.constant 0 : i32
    return %c0_i32, %c0_i32_0 : i32, i32
  }
  func.func @transform_6(%arg0: i32) -> (i32, i32) {
    %c0_i32 = arith.constant 0 : i32
    %c0_i32_0 = arith.constant 0 : i32
    %c0_i32_1 = arith.constant 0 : i32
    return %c0_i32, %c0_i32_0 : i32, i32
  }
  func.func @transform_7(%arg0: i32) -> (i32, i32) {
    %c0_i32 = arith.constant 0 : i32
    %c0_i32_0 = arith.constant 0 : i32
    return %arg0, %c0_i32 : i32, i32
  }
}

</mosaic_0001>

<llo_original>
// kernel: _run_kernel.1
$region0: #{_run_kernel.1}
  #allocation0 [shape = 'u32[]', space=smem, size = 0x4, offset = 0x4, fixed_abs, tag = 'smem constant byte address 0x4 - core index']
  #allocation1 [shape = 'u32[144,128]{1,0:T(1,128)}', space=vmem, size = 0x12000, scoped, tag = 'internal scratch']
  %s0 = inlined_call_operand.hbm [shape: f32[16,248], index: 0, kind: input, shape index: {}]
  %s1 = inlined_call_operand.hbm [shape: bf16[248,256], index: 1, kind: input, shape index: {}]
  %s2 = inlined_call_operand.vmem [shape: f32[1,256], index: 2, kind: input, shape index: {}]
  %s3 = inlined_call_operand.hbm [shape: bf16[256,256], index: 3, kind: input, shape index: {}]
  %s4 = inlined_call_operand.vmem [shape: f32[1,256], index: 4, kind: input, shape index: {}]
  %s5 = inlined_call_operand.hbm [shape: bf16[256,128], index: 5, kind: input, shape index: {}]
  %s6 = inlined_call_operand.vmem [shape: f32[1,128], index: 6, kind: input, shape index: {}]
  %s7 = inlined_call_operand.hbm [shape: f32[16,128], index: 7, kind: output, shape index: {}]
  %s8 = sld [smem:[#allocation0]]
  $region54: #{_run_kernel.1} parent=0
    _
  %s10 = ssub.s32 1, %s8
  %s11 = scalar_select 0, %s10, %s8
  $region1: #{_run_kernel.1} parent=0
    #allocation2 [shape = 'u8[16384]{0}', space=vmem, size = 0x4000, scoped, tag = 'input window, operand 0, single buffered']
    #allocation3 [shape = 's32[1]{0}', space=sflag, size = 0x4, scoped, tag = 'scoped memory for _run_kernel.1']
    #allocation4 [shape = 's32[1]{0}', space=sflag, size = 0x4, scoped, tag = 'scoped memory for _run_kernel.1']
    #allocation5 [shape = 'u8[126976]{0}', space=vmem, size = 0x1f000, scoped, tag = 'input window, operand 1, single buffered']
    #allocation6 [shape = 's32[1]{0}', space=sflag, size = 0x4, scoped, tag = 'scoped memory for _run_kernel.1']
    #allocation7 [shape = 'u8[131072]{0}', space=vmem, size = 0x20000, scoped, tag = 'input window, operand 3, single buffered']
    #allocation8 [shape = 'u8[65536]{0}', space=vmem, size = 0x10000, scoped, tag = 'input window, operand 5, single buffered']
    #allocation9 [shape = 's32[1]{0}', space=sflag, size = 0x4, scoped, tag = 'scoped memory for _run_kernel.1']
    #allocation10 [shape = 'u8[8192]{0}', space=vmem, size = 0x2000, scoped, tag = 'output window, operand 0, single buffered']
    %12 = vsyncpa [#allocation3], 0
    %13 = vsyncpa [#allocation6], 0
    %14 = vsyncpa [#allocation9], 0
    %15 = vsyncpa [#allocation4], 0
    // Predicated region
    $region2: #{_run_kernel.1} parent=1 // pred_check
      _
    $region3: #{_run_kernel.1} parent=1 // pred_check_branch
      %17 = sbr.rel (0) target = $region5
    $region4: #{_run_kernel.1} parent=1 // pred_region
      %s19 = ssub.s32 512, 512
      %20 = vsyncadd [#allocation3], %s19
      %s21 = sshll.u32 [#allocation2], 4
      %s22 = int_to_ptr.vmem [resolvable:$true] %s21
      %27 = dma.hbm_to_vmem [thread:$0]  %s0, 512, %s22, [#allocation3], 256, 256, 16
    $region5: #{_run_kernel.1} parent=1 // pred_fallthru
      _
    // Predicated region
    $region6: #{_run_kernel.1} parent=1 // pred_check
      _
    $region7: #{_run_kernel.1} parent=1 // pred_check_branch
      %29 = sbr.rel (0) target = $region9
    $region8: #{_run_kernel.1} parent=1 // pred_region
      %s31 = ssub.s32 3968, 3968
      %32 = vsyncadd [#allocation6], %s31
      %s33 = sshll.u32 [#allocation5], 4
      %s34 = int_to_ptr.vmem [resolvable:$true] %s33
      %39 = dma.hbm_to_vmem [thread:$0]  %s1, 3968, %s34, [#allocation6], 128, 128, 8
    $region9: #{_run_kernel.1} parent=1 // pred_fallthru
      _
    // Predicated region
    $region10: #{_run_kernel.1} parent=1 // pred_check
      _
    $region11: #{_run_kernel.1} parent=1 // pred_check_branch
      %41 = sbr.rel (0) target = $region13
    $region12: #{_run_kernel.1} parent=1 // pred_region
      _
    $region13: #{_run_kernel.1} parent=1 // pred_fallthru
      _
    // Predicated region
    $region14: #{_run_kernel.1} parent=1 // pred_check
      _
    $region15: #{_run_kernel.1} parent=1 // pred_check_branch
      %43 = sbr.rel (0) target = $region17
    $region16: #{_run_kernel.1} parent=1 // pred_region
      %s45 = ssub.s32 4096, 4096
      %46 = vsyncadd [#allocation6], %s45
      %s47 = sshll.u32 [#allocation7], 4
      %s48 = int_to_ptr.vmem [resolvable:$true] %s47
      %53 = dma.hbm_to_vmem [thread:$0]  %s3, 4096, %s48, [#allocation6], 128, 128, 8
    $region17: #{_run_kernel.1} parent=1 // pred_fallthru
      _
    // Predicated region
    $region18: #{_run_kernel.1} parent=1 // pred_check
      _
    $region19: #{_run_kernel.1} parent=1 // pred_check_branch
      %55 = sbr.rel (0) target = $region21
    $region20: #{_run_kernel.1} parent=1 // pred_region
      _
    $region21: #{_run_kernel.1} parent=1 // pred_fallthru
      _
    // Predicated region
    $region22: #{_run_kernel.1} parent=1 // pred_check
      _
    $region23: #{_run_kernel.1} parent=1 // pred_check_branch
      %57 = sbr.rel (0) target = $region25
    $region24: #{_run_kernel.1} parent=1 // pred_region
      %s59 = ssub.s32 2048, 2048
      %60 = vsyncadd [#allocation9], %s59
      %s61 = sshll.u32 [#allocation8], 4
      %s62 = int_to_ptr.vmem [resolvable:$true] %s61
      %67 = dma.hbm_to_vmem [thread:$0]  %s5, 2048, %s62, [#allocation9], 64, 64, 4
    $region25: #{_run_kernel.1} parent=1 // pred_fallthru
      _
    // Predicated region
    $region26: #{_run_kernel.1} parent=1 // pred_check
      _
    $region27: #{_run_kernel.1} parent=1 // pred_check_branch
      %69 = sbr.rel (0) target = $region29
    $region28: #{_run_kernel.1} parent=1 // pred_region
      _
    $region29: #{_run_kernel.1} parent=1 // pred_fallthru
      _
    // Predicated region
    $region30: #{_run_kernel.1} parent=1 // pred_check
      _
    $region31: #{_run_kernel.1} parent=1 // pred_check_branch
      %71 = sbr.rel (0) target = $region33
    $region32: #{_run_kernel.1} parent=1 // pred_region
      %72 = dma.done [#allocation3], 512
    $region33: #{_run_kernel.1} parent=1 // pred_fallthru
      _
    // Predicated region
    $region34: #{_run_kernel.1} parent=1 // pred_check
      _
    $region35: #{_run_kernel.1} parent=1 // pred_check_branch
      %74 = sbr.rel (0) target = $region37
    $region36: #{_run_kernel.1} parent=1 // pred_region
      %75 = dma.done [#allocation6], 3968
    $region37: #{_run_kernel.1} parent=1 // pred_fallthru
      _
    // Predicated region
    $region38: #{_run_kernel.1} parent=1 // pred_check
      _
    $region39: #{_run_kernel.1} parent=1 // pred_check_branch
      %77 = sbr.rel (0) target = $region41
    $region40: #{_run_kernel.1} parent=1 // pred_region
      %78 = dma.done [#allocation6], 4096
    $region41: #{_run_kernel.1} parent=1 // pred_fallthru
      _
    // Predicated region
    $region42: #{_run_kernel.1} parent=1 // pred_check
      _
    $region43: #{_run_kernel.1} parent=1 // pred_check_branch
      %80 = sbr.rel (0) target = $region45
    $region44: #{_run_kernel.1} parent=1 // pred_region
      %81 = dma.done [#allocation9], 2048
    $region45: #{_run_kernel.1} parent=1 // pred_fallthru
      _
    %v83 = vld [vmem:[#allocation2] sm:$0xff]
    %v84 = vld [vmem:[#allocation2 + $0x8] sm:$0xff]
    %v85 = vld [vmem:[#allocation2 + $0x10] sm:$0xff]
    %v86 = vld [vmem:[#allocation2 + $0x18] sm:$0xff]
    %v87 = vpack.c.bf16 %v85, %v83
    %v88 = vpack.c.bf16 %v86, %v84
    %v89 = vld [vmem:[#allocation5] sm:$0xff]
    %v90 = vld [vmem:[#allocation5 + $0x8] sm:$0xff]
    %v91 = vld [vmem:[#allocation5 + $0x10] sm:$0xff]
    %v92 = vld [vmem:[#allocation5 + $0x18] sm:$0xff]
    %v93 = vld [vmem:[#allocation5 + $0x20] sm:$0xff]
    %v94 = vld [vmem:[#allocation5 + $0x28] sm:$0xff]
    %v95 = vld [vmem:[#allocation5 + $0x30] sm:$0xff]
    %v96 = vld [vmem:[#allocation5 + $0x38] sm:$0xff]
    %v97 = vld [vmem:[#allocation5 + $0x40] sm:$0xff]
    %v98 = vld [vmem:[#allocation5 + $0x48] sm:$0xff]
    %v99 = vld [vmem:[#allocation5 + $0x50] sm:$0xff]
    %v100 = vld [vmem:[#allocation5 + $0x58] sm:$0xff]
    %v101 = vld [vmem:[#allocation5 + $0x60] sm:$0xff]
    %v102 = vld [vmem:[#allocation5 + $0x68] sm:$0xff]
    %v103 = vld [vmem:[#allocation5 + $0x70] sm:$0xff]
    %v104 = vld [vmem:[#allocation5 + $0x78] sm:$0xff]
    %v105 = vld [vmem:[#allocation5 + $0x80] sm:$0xff]
    %v106 = vld [vmem:[#allocation5 + $0x88] sm:$0xff]
    %v107 = vld [vmem:[#allocation5 + $0x90] sm:$0xff]
    %v108 = vld [vmem:[#allocation5 + $0x98] sm:$0xff]
    %v109 = vld [vmem:[#allocation5 + $0xa0] sm:$0xff]
    %v110 = vld [vmem:[#allocation5 + $0xa8] sm:$0xff]
    %v111 = vld [vmem:[#allocation5 + $0xb0] sm:$0xff]
    %v112 = vld [vmem:[#allocation5 + $0xb8] sm:$0xff]
    %v113 = vld [vmem:[#allocation5 + $0xc0] sm:$0xff]
    %v114 = vld [vmem:[#allocation5 + $0xc8] sm:$0xff]
    %v115 = vld [vmem:[#allocation5 + $0xd0] sm:$0xff]
    %v116 = vld [vmem:[#allocation5 + $0xd8] sm:$0xff]
    %v117 = vld [vmem:[#allocation5 + $0xe0] sm:$0xff]
    %v118 = vld [vmem:[#allocation5 + $0xe8] sm:$0xff]
    %v119 = vld [vmem:[#allocation5 + $0xf0] sm:$0xff]
    %v120 = vld [vmem:[%s2] sm:$0x3]
    %v122 = vlaneseq
    %v123 = vshrl.u32 %v122, 7
    %v124 = vsub.s32 0, %v123
    %v125 = vrot.slane %v120, %v124
    %v126 = vlaneseq
    %v127 = vshrl.u32 %v126, 7
    %v128 = vsub.s32 1, %v127
    %v129 = vrot.slane %v120, %v128
    %v163 = vunpack.c.l.b16 %v89
    %v164 = vunpack.c.h.b16 %v89
    %v165 = vunpack.c.l.b16 %v90
    %v166 = vunpack.c.h.b16 %v90
    %v167 = vunpack.c.l.b16 %v91
    %v168 = vunpack.c.h.b16 %v91
    %v169 = vunpack.c.l.b16 %v92
    %v170 = vunpack.c.h.b16 %v92
    %v171 = vunpack.c.l.b16 %v93
    %v172 = vunpack.c.h.b16 %v93
    %v173 = vunpack.c.l.b16 %v94
    %v174 = vunpack.c.h.b16 %v94
    %v175 = vunpack.c.l.b16 %v95
    %v176 = vunpack.c.h.b16 %v95
    %v177 = vunpack.c.l.b16 %v96
    %v178 = vunpack.c.h.b16 %v96
    %v179 = vunpack.c.l.b16 %v97
    %v180 = vunpack.c.h.b16 %v97
    %v181 = vunpack.c.l.b16 %v98
    %v182 = vunpack.c.h.b16 %v98
    %v183 = vunpack.c.l.b16 %v99
    %v184 = vunpack.c.h.b16 %v99
    %v185 = vunpack.c.l.b16 %v100
    %v186 = vunpack.c.h.b16 %v100
    %v187 = vunpack.c.l.b16 %v101
    %v188 = vunpack.c.h.b16 %v101
    %v189 = vunpack.c.l.b16 %v102
    %v190 = vunpack.c.h.b16 %v102
    %v191 = vunpack.c.l.b16 %v103
    %v192 = vunpack.c.h.b16 %v103
    %v193 = vunpack.c.l.b16 %v104
    %v194 = vunpack.c.h.b16 %v104
    %v195 = vunpack.c.l.b16 %v105
    %v196 = vunpack.c.h.b16 %v105
    %v197 = vunpack.c.l.b16 %v106
    %v198 = vunpack.c.h.b16 %v106
    %v199 = vunpack.c.l.b16 %v107
    %v200 = vunpack.c.h.b16 %v107
    %v201 = vunpack.c.l.b16 %v108
    %v202 = vunpack.c.h.b16 %v108
    %v203 = vunpack.c.l.b16 %v109
    %v204 = vunpack.c.h.b16 %v109
    %v205 = vunpack.c.l.b16 %v110
    %v206 = vunpack.c.h.b16 %v110
    %v207 = vunpack.c.l.b16 %v111
    %v208 = vunpack.c.h.b16 %v111
    %v209 = vunpack.c.l.b16 %v112
    %v210 = vunpack.c.h.b16 %v112
    %v211 = vunpack.c.l.b16 %v113
    %v212 = vunpack.c.h.b16 %v113
    %v213 = vunpack.c.l.b16 %v114
    %v214 = vunpack.c.h.b16 %v114
    %v215 = vunpack.c.l.b16 %v115
    %v216 = vunpack.c.h.b16 %v115
    %v217 = vunpack.c.l.b16 %v116
    %v218 = vunpack.c.h.b16 %v116
    %v219 = vunpack.c.l.b16 %v117
    %v220 = vunpack.c.h.b16 %v117
    %v221 = vunpack.c.l.b16 %v118
    %v222 = vunpack.c.h.b16 %v118
    %v223 = vunpack.c.l.b16 %v119
    %v224 = vunpack.c.h.b16 %v119
    %v225 = vpack.c.b16 %v165, %v163
    %v226 = vpack.c.b16 %v166, %v164
    %v227 = vpack.c.b16 %v169, %v167
    %v228 = vpack.c.b16 %v170, %v168
    %v229 = vpack.c.b16 %v173, %v171
    %v230 = vpack.c.b16 %v174, %v172
    %v231 = vpack.c.b16 %v177, %v175
    %v232 = vpack.c.b16 %v178, %v176
    %v233 = vpack.c.b16 %v181, %v179
    %v234 = vpack.c.b16 %v182, %v180
    %v235 = vpack.c.b16 %v185, %v183
    %v236 = vpack.c.b16 %v186, %v184
    %v237 = vpack.c.b16 %v189, %v187
    %v238 = vpack.c.b16 %v190, %v188
    %v239 = vpack.c.b16 %v193, %v191
    %v240 = vpack.c.b16 %v194, %v192
    %v241 = vpack.c.b16 %v197, %v195
    %v242 = vpack.c.b16 %v198, %v196
    %v243 = vpack.c.b16 %v201, %v199
    %v244 = vpack.c.b16 %v202, %v200
    %v245 = vpack.c.b16 %v205, %v203
    %v246 = vpack.c.b16 %v206, %v204
    %v247 = vpack.c.b16 %v209, %v207
    %v248 = vpack.c.b16 %v210, %v208
    %v249 = vpack.c.b16 %v213, %v211
    %v250 = vpack.c.b16 %v214, %v212
    %v251 = vpack.c.b16 %v217, %v215
    %v252 = vpack.c.b16 %v218, %v216
    %v253 = vpack.c.b16 %v221, %v219
    %v254 = vpack.c.b16 %v222, %v220
    %v255 = vpack.c.b16 %v223, %v223
    %v256 = vpack.c.b16 %v224, %v224
    %vm287 = vcmask 982016
    %v289 = vsel %vm287, %v88, 0
    %vm291 = vcmask 1043456
    %v293 = vsel %vm291, %v255, 0
    %v296 = vsel %vm291, %v256, 0
    %298 = vmatprep.subr.bf16.mxu0 %v226
    %299 = vmatpush1.bf16.msra.mxu0 %v225
    %300 = vmatprep.subr.bf16.mxu0 %v228
    %301 = vmatpush1.bf16.msra.mxu0 %v227
    %302 = vmatprep.subr.bf16.mxu0 %v230
    %303 = vmatpush1.bf16.msra.mxu0 %v229
    %304 = vmatprep.subr.bf16.mxu0 %v232
    %305 = vmatpush1.bf16.msra.mxu0 %v231
    %306 = vmatprep.subr.bf16.mxu0 %v234
    %307 = vmatpush1.bf16.msra.mxu0 %v233
    %308 = vmatprep.subr.bf16.mxu0 %v236
    %309 = vmatpush1.bf16.msra.mxu0 %v235
    %310 = vmatprep.subr.bf16.mxu0 %v238
    %311 = vmatpush1.bf16.msra.mxu0 %v237
    %312 = vmatprep.subr.bf16.mxu0 %v240
    %313 = vmatpush1.bf16.msra.mxu0 %v239
    %314 = vmatprep.subr.bf16.mxu0 %v242
    %315 = vmatpush1.bf16.msra.mxu0 %v241
    %316 = vmatprep.subr.bf16.mxu0 %v244
    %317 = vmatpush1.bf16.msra.mxu0 %v243
    %318 = vmatprep.subr.bf16.mxu0 %v246
    %319 = vmatpush1.bf16.msra.mxu0 %v245
    %320 = vmatprep.subr.bf16.mxu0 %v248
    %321 = vmatpush1.bf16.msra.mxu0 %v247
    %322 = vmatprep.subr.bf16.mxu0 %v250
    %323 = vmatpush1.bf16.msra.mxu0 %v249
    %324 = vmatprep.subr.bf16.mxu0 %v252
    %325 = vmatpush1.bf16.msra.mxu0 %v251
    %326 = vmatprep.subr.bf16.mxu0 %v254
    %327 = vmatpush1.bf16.msra.mxu0 %v253
    %328 = vmatprep.subr.bf16.mxu0 %v296
    %329 = vmatpush1.bf16.msra.mxu0 %v293
    %330 = vmatprep.mubr.bf16.mxu0 %v289
    %331 = vmatmul.mubr.bf16.gmra.mrb[0].mxu0 %v87
    %v332 = vpop.f32.mrb[0].mxu0
    %v333 = vadd.f32 %v125, %v332
    %v334 = vpop.f32.mrb[0].mxu0
    %v335 = vadd.f32 %v129, %v334
    %v336 = vpop.f32.mrb[0].mxu0
    %v337 = vadd.f32 %v125, %v336
    %v338 = vpop.f32.mrb[0].mxu0
    %v339 = vadd.f32 %v129, %v338
    %340 = vdwg.mxu0
    %v341 = vpack.c.bf16 %v337, %v333
    %v342 = vpack.c.bf16 %v339, %v335
    %v343 = vtanh.bf16.pop %v341
    %v344 = vtanh.bf16.pop %v342
    %v345 = vld [vmem:[#allocation7] sm:$0xff]
    %v346 = vld [vmem:[#allocation7 + $0x8] sm:$0xff]
    %v347 = vld [vmem:[#allocation7 + $0x10] sm:$0xff]
    %v348 = vld [vmem:[#allocation7 + $0x18] sm:$0xff]
    %v349 = vld [vmem:[#allocation7 + $0x20] sm:$0xff]
    %v350 = vld [vmem:[#allocation7 + $0x28] sm:$0xff]
    %v351 = vld [vmem:[#allocation7 + $0x30] sm:$0xff]
    %v352 = vld [vmem:[#allocation7 + $0x38] sm:$0xff]
    %v353 = vld [vmem:[#allocation7 + $0x40] sm:$0xff]
    %v354 = vld [vmem:[#allocation7 + $0x48] sm:$0xff]
    %v355 = vld [vmem:[#allocation7 + $0x50] sm:$0xff]
    %v356 = vld [vmem:[#allocation7 + $0x58] sm:$0xff]
    %v357 = vld [vmem:[#allocation7 + $0x60] sm:$0xff]
    %v358 = vld [vmem:[#allocation7 + $0x68] sm:$0xff]
    %v359 = vld [vmem:[#allocation7 + $0x70] sm:$0xff]
    %v360 = vld [vmem:[#allocation7 + $0x78] sm:$0xff]
    %v361 = vld [vmem:[#allocation7 + $0x80] sm:$0xff]
    %v362 = vld [vmem:[#allocation7 + $0x88] sm:$0xff]
    %v363 = vld [vmem:[#allocation7 + $0x90] sm:$0xff]
    %v364 = vld [vmem:[#allocation7 + $0x98] sm:$0xff]
    %v365 = vld [vmem:[#allocation7 + $0xa0] sm:$0xff]
    %v366 = vld [vmem:[#allocation7 + $0xa8] sm:$0xff]
    %v367 = vld [vmem:[#allocation7 + $0xb0] sm:$0xff]
    %v368 = vld [vmem:[#allocation7 + $0xb8] sm:$0xff]
    %v369 = vld [vmem:[#allocation7 + $0xc0] sm:$0xff]
    %v370 = vld [vmem:[#allocation7 + $0xc8] sm:$0xff]
    %v371 = vld [vmem:[#allocation7 + $0xd0] sm:$0xff]
    %v372 = vld [vmem:[#allocation7 + $0xd8] sm:$0xff]
    %v373 = vld [vmem:[#allocation7 + $0xe0] sm:$0xff]
    %v374 = vld [vmem:[#allocation7 + $0xe8] sm:$0xff]
    %v375 = vld [vmem:[#allocation7 + $0xf0] sm:$0xff]
    %v376 = vld [vmem:[#allocation7 + $0xf8] sm:$0xff]
    %v377 = vld [vmem:[%s4] sm:$0x3]
    %v379 = vlaneseq
    %v380 = vshrl.u32 %v379, 7
    %v381 = vsub.s32 0, %v380
    %v382 = vrot.slane %v377, %v381
    %v383 = vlaneseq
    %v384 = vshrl.u32 %v383, 7
    %v385 = vsub.s32 1, %v384
    %v386 = vrot.slane %v377, %v385
    %v421 = vunpack.c.l.b16 %v345
    %v422 = vunpack.c.h.b16 %v345
    %v423 = vunpack.c.l.b16 %v346
    %v424 = vunpack.c.h.b16 %v346
    %v425 = vunpack.c.l.b16 %v347
    %v426 = vunpack.c.h.b16 %v347
    %v427 = vunpack.c.l.b16 %v348
    %v428 = vunpack.c.h.b16 %v348
    %v429 = vunpack.c.l.b16 %v349
    %v430 = vunpack.c.h.b16 %v349
    %v431 = vunpack.c.l.b16 %v350
    %v432 = vunpack.c.h.b16 %v350
    %v433 = vunpack.c.l.b16 %v351
    %v434 = vunpack.c.h.b16 %v351
    %v435 = vunpack.c.l.b16 %v352
    %v436 = vunpack.c.h.b16 %v352
    %v437 = vunpack.c.l.b16 %v353
    %v438 = vunpack.c.h.b16 %v353
    %v439 = vunpack.c.l.b16 %v354
    %v440 = vunpack.c.h.b16 %v354
    %v441 = vunpack.c.l.b16 %v355
    %v442 = vunpack.c.h.b16 %v355
    %v443 = vunpack.c.l.b16 %v356
    %v444 = vunpack.c.h.b16 %v356
    %v445 = vunpack.c.l.b16 %v357
    %v446 = vunpack.c.h.b16 %v357
    %v447 = vunpack.c.l.b16 %v358
    %v448 = vunpack.c.h.b16 %v358
    %v449 = vunpack.c.l.b16 %v359
    %v450 = vunpack.c.h.b16 %v359
    %v451 = vunpack.c.l.b16 %v360
    %v452 = vunpack.c.h.b16 %v360
    %v453 = vunpack.c.l.b16 %v361
    %v454 = vunpack.c.h.b16 %v361
    %v455 = vunpack.c.l.b16 %v362
    %v456 = vunpack.c.h.b16 %v362
    %v457 = vunpack.c.l.b16 %v363
    %v458 = vunpack.c.h.b16 %v363
    %v459 = vunpack.c.l.b16 %v364
    %v460 = vunpack.c.h.b16 %v364
    %v461 = vunpack.c.l.b16 %v365
    %v462 = vunpack.c.h.b16 %v365
    %v463 = vunpack.c.l.b16 %v366
    %v464 = vunpack.c.h.b16 %v366
    %v465 = vunpack.c.l.b16 %v367
    %v466 = vunpack.c.h.b16 %v367
    %v467 = vunpack.c.l.b16 %v368
    %v468 = vunpack.c.h.b16 %v368
    %v469 = vunpack.c.l.b16 %v369
    %v470 = vunpack.c.h.b16 %v369
    %v471 = vunpack.c.l.b16 %v370
    %v472 = vunpack.c.h.b16 %v370
    %v473 = vunpack.c.l.b16 %v371
    %v474 = vunpack.c.h.b16 %v371
    %v475 = vunpack.c.l.b16 %v372
    %v476 = vunpack.c.h.b16 %v372
    %v477 = vunpack.c.l.b16 %v373
    %v478 = vunpack.c.h.b16 %v373
    %v479 = vunpack.c.l.b16 %v374
    %v480 = vunpack.c.h.b16 %v374
    %v481 = vunpack.c.l.b16 %v375
    %v482 = vunpack.c.h.b16 %v375
    %v483 = vunpack.c.l.b16 %v376
    %v484 = vunpack.c.h.b16 %v376
    %v485 = vpack.c.b16 %v423, %v421
    %v486 = vpack.c.b16 %v424, %v422
    %v487 = vpack.c.b16 %v427, %v425
    %v488 = vpack.c.b16 %v428, %v426
    %v489 = vpack.c.b16 %v431, %v429
    %v490 = vpack.c.b16 %v432, %v430
    %v491 = vpack.c.b16 %v435, %v433
    %v492 = vpack.c.b16 %v436, %v434
    %v493 = vpack.c.b16 %v439, %v437
    %v494 = vpack.c.b16 %v440, %v438
    %v495 = vpack.c.b16 %v443, %v441
    %v496 = vpack.c.b16 %v444, %v442
    %v497 = vpack.c.b16 %v447, %v445
    %v498 = vpack.c.b16 %v448, %v446
    %v499 = vpack.c.b16 %v451, %v449
    %v500 = vpack.c.b16 %v452, %v450
    %v501 = vpack.c.b16 %v455, %v453
    %v502 = vpack.c.b16 %v456, %v454
    %v503 = vpack.c.b16 %v459, %v457
    %v504 = vpack.c.b16 %v460, %v458
    %v505 = vpack.c.b16 %v463, %v461
    %v506 = vpack.c.b16 %v464, %v462
    %v507 = vpack.c.b16 %v467, %v465
    %v508 = vpack.c.b16 %v468, %v466
    %v509 = vpack.c.b16 %v471, %v469
    %v510 = vpack.c.b16 %v472, %v470
    %v511 = vpack.c.b16 %v475, %v473
    %v512 = vpack.c.b16 %v476, %v474
    %v513 = vpack.c.b16 %v479, %v477
    %v514 = vpack.c.b16 %v480, %v478
    %v515 = vpack.c.b16 %v483, %v481
    %v516 = vpack.c.b16 %v484, %v482
    %549 = vmatprep.subr.bf16.mxu0 %v486
    %550 = vmatpush1.bf16.msra.mxu0 %v485
    %551 = vmatprep.subr.bf16.mxu0 %v488
    %552 = vmatpush1.bf16.msra.mxu0 %v487
    %553 = vmatprep.subr.bf16.mxu0 %v490
    %554 = vmatpush1.bf16.msra.mxu0 %v489
    %555 = vmatprep.subr.bf16.mxu0 %v492
    %556 = vmatpush1.bf16.msra.mxu0 %v491
    %557 = vmatprep.subr.bf16.mxu0 %v494
    %558 = vmatpush1.bf16.msra.mxu0 %v493
    %559 = vmatprep.subr.bf16.mxu0 %v496
    %560 = vmatpush1.bf16.msra.mxu0 %v495
    %561 = vmatprep.subr.bf16.mxu0 %v498
    %562 = vmatpush1.bf16.msra.mxu0 %v497
    %563 = vmatprep.subr.bf16.mxu0 %v500
    %564 = vmatpush1.bf16.msra.mxu0 %v499
    %565 = vmatprep.subr.bf16.mxu0 %v502
    %566 = vmatpush1.bf16.msra.mxu0 %v501
    %567 = vmatprep.subr.bf16.mxu0 %v504
    %568 = vmatpush1.bf16.msra.mxu0 %v503
    %569 = vmatprep.subr.bf16.mxu0 %v506
    %570 = vmatpush1.bf16.msra.mxu0 %v505
    %571 = vmatprep.subr.bf16.mxu0 %v508
    %572 = vmatpush1.bf16.msra.mxu0 %v507
    %573 = vmatprep.subr.bf16.mxu0 %v510
    %574 = vmatpush1.bf16.msra.mxu0 %v509
    %575 = vmatprep.subr.bf16.mxu0 %v512
    %576 = vmatpush1.bf16.msra.mxu0 %v511
    %577 = vmatprep.subr.bf16.mxu0 %v514
    %578 = vmatpush1.bf16.msra.mxu0 %v513
    %579 = vmatprep.subr.bf16.mxu0 %v516
    %580 = vmatpush1.bf16.msra.mxu0 %v515
    %581 = vmatprep.mubr.bf16.mxu0 %v344
    %582 = vmatmul.mubr.bf16.gmra.mrb[0].mxu0 %v343
    %v583 = vpop.f32.mrb[0].mxu0
    %v584 = vadd.f32 %v382, %v583
    %v585 = vpop.f32.mrb[0].mxu0
    %v586 = vadd.f32 %v386, %v585
    %v587 = vpop.f32.mrb[0].mxu0
    %v588 = vadd.f32 %v382, %v587
    %v589 = vpop.f32.mrb[0].mxu0
    %v590 = vadd.f32 %v386, %v589
    %591 = vdwg.mxu0
    %v592 = vpack.c.bf16 %v588, %v584
    %v593 = vpack.c.bf16 %v590, %v586
    %v594 = vtanh.bf16.pop %v592
    %v595 = vtanh.bf16.pop %v593
    %v596 = vld [vmem:[#allocation8] sm:$0xf]
    %v597 = vld [vmem:[#allocation8 + $0x4] sm:$0xf]
    %v598 = vld [vmem:[#allocation8 + $0x8] sm:$0xf]
    %v599 = vld [vmem:[#allocation8 + $0xc] sm:$0xf]
    %v600 = vld [vmem:[#allocation8 + $0x10] sm:$0xf]
    %v601 = vld [vmem:[#allocation8 + $0x14] sm:$0xf]
    %v602 = vld [vmem:[#allocation8 + $0x18] sm:$0xf]
    %v603 = vld [vmem:[#allocation8 + $0x1c] sm:$0xf]
    %v604 = vld [vmem:[#allocation8 + $0x20] sm:$0xf]
    %v605 = vld [vmem:[#allocation8 + $0x24] sm:$0xf]
    %v606 = vld [vmem:[#allocation8 + $0x28] sm:$0xf]
    %v607 = vld [vmem:[#allocation8 + $0x2c] sm:$0xf]
    %v608 = vld [vmem:[#allocation8 + $0x30] sm:$0xf]
    %v609 = vld [vmem:[#allocation8 + $0x34] sm:$0xf]
    %v610 = vld [vmem:[#allocation8 + $0x38] sm:$0xf]
    %v611 = vld [vmem:[#allocation8 + $0x3c] sm:$0xf]
    %v612 = vld [vmem:[#allocation8 + $0x40] sm:$0xf]
    %v613 = vld [vmem:[#allocation8 + $0x44] sm:$0xf]
    %v614 = vld [vmem:[#allocation8 + $0x48] sm:$0xf]
    %v615 = vld [vmem:[#allocation8 + $0x4c] sm:$0xf]
    %v616 = vld [vmem:[#allocation8 + $0x50] sm:$0xf]
    %v617 = vld [vmem:[#allocation8 + $0x54] sm:$0xf]
    %v618 = vld [vmem:[#allocation8 + $0x58] sm:$0xf]
    %v619 = vld [vmem:[#allocation8 + $0x5c] sm:$0xf]
    %v620 = vld [vmem:[#allocation8 + $0x60] sm:$0xf]
    %v621 = vld [vmem:[#allocation8 + $0x64] sm:$0xf]
    %v622 = vld [vmem:[#allocation8 + $0x68] sm:$0xf]
    %v623 = vld [vmem:[#allocation8 + $0x6c] sm:$0xf]
    %v624 = vld [vmem:[#allocation8 + $0x70] sm:$0xf]
    %v625 = vld [vmem:[#allocation8 + $0x74] sm:$0xf]
    %v626 = vld [vmem:[#allocation8 + $0x78] sm:$0xf]
    %v627 = vld [vmem:[#allocation8 + $0x7c] sm:$0xf]
    %v628 = vld [vmem:[%s6] sm:$0x1]
    %v630 = vlaneseq
    %v631 = vshrl.u32 %v630, 7
    %v632 = vsub.s32 0, %v631
    %v633 = vrot.slane %v628, %v632
    %v667 = vunpack.c.l.b16 %v596
    %v668 = vunpack.c.l.b16 %v597
    %v669 = vunpack.c.l.b16 %v598
    %v670 = vunpack.c.l.b16 %v599
    %v671 = vunpack.c.l.b16 %v600
    %v672 = vunpack.c.l.b16 %v601
    %v673 = vunpack.c.l.b16 %v602
    %v674 = vunpack.c.l.b16 %v603
    %v675 = vunpack.c.l.b16 %v604
    %v676 = vunpack.c.l.b16 %v605
    %v677 = vunpack.c.l.b16 %v606
    %v678 = vunpack.c.l.b16 %v607
    %v679 = vunpack.c.l.b16 %v608
    %v680 = vunpack.c.l.b16 %v609
    %v681 = vunpack.c.l.b16 %v610
    %v682 = vunpack.c.l.b16 %v611
    %v683 = vunpack.c.l.b16 %v612
    %v684 = vunpack.c.l.b16 %v613
    %v685 = vunpack.c.l.b16 %v614
    %v686 = vunpack.c.l.b16 %v615
    %v687 = vunpack.c.l.b16 %v616
    %v688 = vunpack.c.l.b16 %v617
    %v689 = vunpack.c.l.b16 %v618
    %v690 = vunpack.c.l.b16 %v619
    %v691 = vunpack.c.l.b16 %v620
    %v692 = vunpack.c.l.b16 %v621
    %v693 = vunpack.c.l.b16 %v622
    %v694 = vunpack.c.l.b16 %v623
    %v695 = vunpack.c.l.b16 %v624
    %v696 = vunpack.c.l.b16 %v625
    %v697 = vunpack.c.l.b16 %v626
    %v698 = vunpack.c.l.b16 %v627
    %v699 = vpack.c.b16 %v668, %v667
    %v700 = vpack.c.b16 %v670, %v669
    %v701 = vpack.c.b16 %v672, %v671
    %v702 = vpack.c.b16 %v674, %v673
    %v703 = vpack.c.b16 %v676, %v675
    %v704 = vpack.c.b16 %v678, %v677
    %v705 = vpack.c.b16 %v680, %v679
    %v706 = vpack.c.b16 %v682, %v681
    %v707 = vpack.c.b16 %v684, %v683
    %v708 = vpack.c.b16 %v686, %v685
    %v709 = vpack.c.b16 %v688, %v687
    %v710 = vpack.c.b16 %v690, %v689
    %v711 = vpack.c.b16 %v692, %v691
    %v712 = vpack.c.b16 %v694, %v693
    %v713 = vpack.c.b16 %v696, %v695
    %v714 = vpack.c.b16 %v698, %v697
    %731 = vmatprep.subr.bf16.mxu0 0
    %732 = vmatpush1.bf16.msra.mxu0 %v699
    %733 = vmatprep.subr.bf16.mxu0 0
    %734 = vmatpush1.bf16.msra.mxu0 %v700
    %735 = vmatprep.subr.bf16.mxu0 0
    %736 = vmatpush1.bf16.msra.mxu0 %v701
    %737 = vmatprep.subr.bf16.mxu0 0
    %738 = vmatpush1.bf16.msra.mxu0 %v702
    %739 = vmatprep.subr.bf16.mxu0 0
    %740 = vmatpush1.bf16.msra.mxu0 %v703
    %741 = vmatprep.subr.bf16.mxu0 0
    %742 = vmatpush1.bf16.msra.mxu0 %v704
    %743 = vmatprep.subr.bf16.mxu0 0
    %744 = vmatpush1.bf16.msra.mxu0 %v705
    %745 = vmatprep.subr.bf16.mxu0 0
    %746 = vmatpush1.bf16.msra.mxu0 %v706
    %747 = vmatprep.subr.bf16.mxu0 0
    %748 = vmatpush1.bf16.msra.mxu0 %v707
    %749 = vmatprep.subr.bf16.mxu0 0
    %750 = vmatpush1.bf16.msra.mxu0 %v708
    %751 = vmatprep.subr.bf16.mxu0 0
    %752 = vmatpush1.bf16.msra.mxu0 %v709
    %753 = vmatprep.subr.bf16.mxu0 0
    %754 = vmatpush1.bf16.msra.mxu0 %v710
    %755 = vmatprep.subr.bf16.mxu0 0
    %756 = vmatpush1.bf16.msra.mxu0 %v711
    %757 = vmatprep.subr.bf16.mxu0 0
    %758 = vmatpush1.bf16.msra.mxu0 %v712
    %759 = vmatprep.subr.bf16.mxu0 0
    %760 = vmatpush1.bf16.msra.mxu0 %v713
    %761 = vmatprep.subr.bf16.mxu0 0
    %762 = vmatpush1.bf16.msra.mxu0 %v714
    %763 = vmatprep.mubr.bf16.mxu0 %v595
    %764 = vmatmul.mubr.bf16.gmra.mrb[0].mxu0 %v594
    %v765 = vpop.f32.mrb[0].mxu0
    %v766 = vadd.f32 %v633, %v765
    %v767 = vpop.f32.mrb[0].mxu0
    %v768 = vpop.f32.mrb[0].mxu0
    %v769 = vadd.f32 %v633, %v768
    %v770 = vpop.f32.mrb[0].mxu0
    %771 = vdwg.mxu0
    %772 = vst [vmem:[#allocation10] sm:$0xff] %v766
    %773 = vst [vmem:[#allocation10 + $0x8] sm:$0xff] %v769
    // Predicated region
    $region46: #{_run_kernel.1} parent=1 // pred_check
      _
    $region47: #{_run_kernel.1} parent=1 // pred_check_branch
      %775 = sbr.rel (0) target = $region49
    $region48: #{_run_kernel.1} parent=1 // pred_region
      %s777 = ssub.s32 256, 256
      %778 = vsyncadd [#allocation4], %s777
      %s779 = sshll.u32 [#allocation10], 4
      %s780 = int_to_ptr.vmem [resolvable:$true] %s779
      %785 = dma.vmem_to_hbm [thread:$0]  %s780, 256, %s7, [#allocation4], 128, 128, 8
    $region49: #{_run_kernel.1} parent=1 // pred_fallthru
      _
    // Predicated region
    $region50: #{_run_kernel.1} parent=1 // pred_check
      _
    $region51: #{_run_kernel.1} parent=1 // pred_check_branch
      %787 = sbr.rel (0) target = $region53
    $region52: #{_run_kernel.1} parent=1 // pred_region
      %788 = dma.done [#allocation4], 256
    $region53: #{_run_kernel.1} parent=1 // pred_fallthru
      _
    %789 = vsyncpa [#allocation3], 1
    %790 = vsyncpa [#allocation6], 1
    %791 = vsyncpa [#allocation9], 1
    %792 = vsyncpa [#allocation4], 1

</llo_original>
